<compile_context>
chip_gen: v5e
topology: v5e:2x2
jax: 0.10.0
libtpu: 0.0.40
codegen_flags: <defaults>
</compile_context>

<pallas_src>
import jax
import jax.numpy as jnp
from jax.experimental import pallas as pl
from jax.experimental.pallas import tpu as pltpu


def _identity_kernel(x_ref, o_ref):
    # Whole-tile load/store; lane-dense (full-width) unmasked stores.
    o_ref[...] = x_ref[...]


def _min_sublane(dtype) -> int:
    """dtype-aware minimum second-minor tile (8 f32, 16 bf16, 32 int8)."""
    itemsize = jnp.dtype(dtype).itemsize
    return max(8, 32 // max(1, itemsize))


def _lane_width(total_elems: int) -> int | None:
    """Largest lane-dense width (multiple of 128, capped at 1024) dividing total."""
    if total_elems % 128 != 0:
        return None
    w = 128
    while total_elems % (w * 2) == 0 and w < 1024:
        w *= 2
    return w


def _choose_rows(rows_total: int, row_bytes: int, target_block_bytes: int,
                 sub: int) -> int:
    """Rows per block: ~target bytes, multiple of `sub`, prefer divisor of total."""
    if rows_total <= sub:
        return rows_total
    rows = max(sub, (target_block_bytes // max(1, row_bytes)) // sub * sub)
    rows = min(rows, rows_total)
    rows = max(sub, (rows // sub) * sub)
    # Prefer a nearby block size that divides rows_total -> no ragged final
    # block (all stores unmasked, all DMAs full-size).  Only accept a divisor
    # within 2x of the target so blocks never get pathologically small.
    for cand in range(rows, max(sub, rows // 2) - 1, -sub):
        if rows_total % cand == 0:
            return cand
    return rows


def _pallas_copy_2d(x, *, target_block_bytes):
    """Route a 2-D array through a tiled, lane-dense Pallas identity kernel."""
    n, f = x.shape
    itemsize = jnp.dtype(x.dtype).itemsize
    sub = _min_sublane(x.dtype)

    total = n * f
    w = _lane_width(total)
    if w is not None:
        # Lane-dense flattened view: (rows_total, W) with W a multiple of 128.
        rows_total = total // w
        flat = x.reshape(rows_total, w)
        row_bytes = w * itemsize
    else:
        # Fallback: block on rows with the full feature width (full-dim block
        # is always legal; masked stores only if F is not 128-aligned).
        rows_total, w, flat, row_bytes = n, f, x, f * itemsize

    rows = _choose_rows(rows_total, row_bytes, target_block_bytes, sub)
    grid = (pl.cdiv(rows_total, rows),)

    out = pl.pallas_call(
        _identity_kernel,
        out_shape=jax.ShapeDtypeStruct(flat.shape, flat.dtype),
        grid=grid,
        in_specs=[pl.BlockSpec((rows, w), lambda i: (i, 0))],
        out_specs=pl.BlockSpec((rows, w), lambda i: (i, 0)),
        input_output_aliases={0: 0},  # identity: reuse the input buffer
        compiler_params=pltpu.CompilerParams(
            dimension_semantics=("parallel",),
            vmem_limit_bytes=32 << 20,  # explicit; safe on v5e/v6e/v7x
        ),
    )(flat)
    return out.reshape(n, f)


def gnn_transformer_forward(data, *, use_pallas=False, target_block_bytes=2 << 20):
    """Forward pass matching the (empty) reference forward: a no-op.

    Default path returns `data` untouched (zero HBM traffic — the reference
    forward performs no computation).  With use_pallas=True the data is
    routed through a tiled Pallas identity kernel instead.
    """
    if not use_pallas:
        return data
    return _pallas_copy_2d(data, target_block_bytes=target_block_bytes)


if __name__ == "__main__":
    key = jax.random.PRNGKey(0)

    # Small node-feature matrix: 256 nodes x 128 features.
    data = jax.random.normal(key, (256, 128), dtype=jnp.float32)
    data_host = jax.device_get(data)  # host copy (kernel path aliases input)

    # Fast path (reference semantics: no-op) — checked while `data` is valid.
    out_fast = gnn_transformer_forward(data)
    assert out_fast.shape == data_host.shape and out_fast.dtype == data_host.dtype
    assert bool(jnp.allclose(out_fast, data_host))

    # Pallas pass-through path.
    out_kernel = gnn_transformer_forward(data, use_pallas=True)
    out_kernel = jax.block_until_ready(out_kernel)
    assert out_kernel.shape == data_host.shape
    assert out_kernel.dtype == data_host.dtype
    assert bool(jnp.allclose(out_kernel, data_host))

    # Non-128-multiple feature width exercises the lane-dense flattening.
    key2 = jax.random.PRNGKey(0)
    data2 = jax.random.normal(key2, (64, 96), dtype=jnp.float32)
    data2_host = jax.device_get(data2)
    out2 = jax.block_until_ready(gnn_transformer_forward(data2, use_pallas=True))
    assert out2.shape == data2_host.shape
    assert bool(jnp.allclose(out2, data2_host))

    print("KERNEL_OK")
</pallas_src>

<mosaic_0001>
module attributes {stable_mosaic.version = 11 : i64} {
  func.func @_identity_kernel(%arg0: i32, %arg1: memref<32x1024xf32, #tpu.memory_space<vmem>>, %arg2: memref<32x1024xf32, #tpu.memory_space<vmem>>) attributes {dimension_semantics = [#tpu.dimension_semantics<parallel>], iteration_bounds = array<i64: 1>, scalar_prefetch = 0 : i64, scratch_operands = 0 : i64, tpu.core_type = #tpu.core_type<tc>, window_params = [{transform_indices = @transform_0, window_bounds = array<i64: 32, 1024>}, {transform_indices = @transform_1, window_bounds = array<i64: 32, 1024>}]} {
    %c0 = arith.constant 0 : index
    %c0_0 = arith.constant 0 : index
    %0 = vector.load %arg1[%c0, %c0_0] : memref<32x1024xf32, #tpu.memory_space<vmem>>, vector<32x1024xf32>
    %c0_1 = arith.constant 0 : index
    %c0_2 = arith.constant 0 : index
    %1 = vector.load %arg2[%c0_1, %c0_2] : memref<32x1024xf32, #tpu.memory_space<vmem>>, vector<32x1024xf32>
    tpu.vector_store %arg2[%c0_1, %c0_2], %0 {strides = array<i32>} : memref<32x1024xf32, #tpu.memory_space<vmem>>, vector<32x1024xf32>,
    return
  }
  func.func @transform_0(%arg0: i32) -> (i32, i32) {
    %c0_i32 = arith.constant 0 : i32
    %c0_i32_0 = arith.constant 0 : i32
    return %arg0, %c0_i32 : i32, i32
  }
  func.func @transform_1(%arg0: i32) -> (i32, i32) {
    %c0_i32 = arith.constant 0 : i32
    %c0_i32_0 = arith.constant 0 : i32
    return %arg0, %c0_i32 : i32, i32
  }
}

</mosaic_0001>

<llo_original>
// kernel: tpu_custom_call.1
$region0: #{tpu_custom_call.1}
  #allocation0 [shape = 'u32[]', space=smem, size = 0x4, offset = 0x4, fixed_abs, tag = 'smem constant byte address 0x4 - core index']
  #allocation1 [shape = 'u32[72,128]{1,0:T(1,128)}', space=vmem, size = 0x9000, scoped, tag = 'internal scratch']
  %s0 = inlined_call_operand.hbm [shape: f32[32,1024], index: 0, kind: input, shape index: {}, may-alias: {0,1}]
  %s1 = inlined_call_operand.hbm [shape: f32[32,1024], index: 1, kind: output, shape index: {}, may-alias: {0,1}]
  %s2 = sld [smem:[#allocation0]]
  $region18: #{tpu_custom_call.1} parent=0
    _
  %s4 = ssub.s32 1, %s2
  %s5 = scalar_select 0, %s4, %s2
  $region1: #{tpu_custom_call.1} parent=0
    #allocation2 [shape = 'u8[131072]{0}', space=vmem, size = 0x20000, scoped, tag = 'input window, operand 0, single buffered']
    #allocation3 [shape = 's32[1]{0}', space=sflag, size = 0x4, scoped, tag = 'scoped memory for tpu_custom_call.1']
    #allocation4 [shape = 's32[1]{0}', space=sflag, size = 0x4, scoped, tag = 'scoped memory for tpu_custom_call.1']
    #allocation5 [shape = 'u8[131072]{0}', space=vmem, size = 0x20000, scoped, tag = 'output window, operand 0, single buffered']
    %6 = vsyncpa [#allocation3], 0
    %7 = vsyncpa [#allocation4], 0
    // Predicated region
    $region2: #{tpu_custom_call.1} parent=1 // pred_check
      _
    $region3: #{tpu_custom_call.1} parent=1 // pred_check_branch
      %9 = sbr.rel (0) target = $region5
    $region4: #{tpu_custom_call.1} parent=1 // pred_region
      %11 = vsyncadd [#allocation3], 0
      %s12 = sshll.u32 %s0, 4
      %s13 = int_to_ptr.hbm [resolvable:$true] %s12
      %s14 = sshll.u32 [#allocation2], 4
      %s15 = int_to_ptr.vmem [resolvable:$true] %s14
      %20 = dma.hbm_to_vmem [thread:$0]  %s13, 4096, %s15, [#allocation3], 1024, 1024, 64
    $region5: #{tpu_custom_call.1} parent=1 // pred_fallthru
      _
    // Predicated region
    $region6: #{tpu_custom_call.1} parent=1 // pred_check
      _
    $region7: #{tpu_custom_call.1} parent=1 // pred_check_branch
      %22 = sbr.rel (0) target = $region9
    $region8: #{tpu_custom_call.1} parent=1 // pred_region
      %24 = dma.done [#allocation3], 4096
    $region9: #{tpu_custom_call.1} parent=1 // pred_fallthru
      _
    %v25 = vld [vmem:[#allocation2] sm:$0xff]
    %v26 = vld [vmem:[#allocation2 + $0x8] sm:$0xff]
    %v27 = vld [vmem:[#allocation2 + $0x10] sm:$0xff]
    %v28 = vld [vmem:[#allocation2 + $0x18] sm:$0xff]
    %v29 = vld [vmem:[#allocation2 + $0x20] sm:$0xff]
    %v30 = vld [vmem:[#allocation2 + $0x28] sm:$0xff]
    %v31 = vld [vmem:[#allocation2 + $0x30] sm:$0xff]
    %v32 = vld [vmem:[#allocation2 + $0x38] sm:$0xff]
    %v33 = vld [vmem:[#allocation2 + $0x40] sm:$0xff]
    %v34 = vld [vmem:[#allocation2 + $0x48] sm:$0xff]
    %v35 = vld [vmem:[#allocation2 + $0x50] sm:$0xff]
    %v36 = vld [vmem:[#allocation2 + $0x58] sm:$0xff]
    %v37 = vld [vmem:[#allocation2 + $0x60] sm:$0xff]
    %v38 = vld [vmem:[#allocation2 + $0x68] sm:$0xff]
    %v39 = vld [vmem:[#allocation2 + $0x70] sm:$0xff]
    %v40 = vld [vmem:[#allocation2 + $0x78] sm:$0xff]
    %v41 = vld [vmem:[#allocation2 + $0x80] sm:$0xff]
    %v42 = vld [vmem:[#allocation2 + $0x88] sm:$0xff]
    %v43 = vld [vmem:[#allocation2 + $0x90] sm:$0xff]
    %v44 = vld [vmem:[#allocation2 + $0x98] sm:$0xff]
    %v45 = vld [vmem:[#allocation2 + $0xa0] sm:$0xff]
    %v46 = vld [vmem:[#allocation2 + $0xa8] sm:$0xff]
    %v47 = vld [vmem:[#allocation2 + $0xb0] sm:$0xff]
    %v48 = vld [vmem:[#allocation2 + $0xb8] sm:$0xff]
    %v49 = vld [vmem:[#allocation2 + $0xc0] sm:$0xff]
    %v50 = vld [vmem:[#allocation2 + $0xc8] sm:$0xff]
    %v51 = vld [vmem:[#allocation2 + $0xd0] sm:$0xff]
    %v52 = vld [vmem:[#allocation2 + $0xd8] sm:$0xff]
    %v53 = vld [vmem:[#allocation2 + $0xe0] sm:$0xff]
    %v54 = vld [vmem:[#allocation2 + $0xe8] sm:$0xff]
    %v55 = vld [vmem:[#allocation2 + $0xf0] sm:$0xff]
    %v56 = vld [vmem:[#allocation2 + $0xf8] sm:$0xff]
    %57 = vst [vmem:[#allocation5] sm:$0xff] %v25
    %58 = vst [vmem:[#allocation5 + $0x8] sm:$0xff] %v26
    %59 = vst [vmem:[#allocation5 + $0x10] sm:$0xff] %v27
    %60 = vst [vmem:[#allocation5 + $0x18] sm:$0xff] %v28
    %61 = vst [vmem:[#allocation5 + $0x20] sm:$0xff] %v29
    %62 = vst [vmem:[#allocation5 + $0x28] sm:$0xff] %v30
    %63 = vst [vmem:[#allocation5 + $0x30] sm:$0xff] %v31
    %64 = vst [vmem:[#allocation5 + $0x38] sm:$0xff] %v32
    %65 = vst [vmem:[#allocation5 + $0x40] sm:$0xff] %v33
    %66 = vst [vmem:[#allocation5 + $0x48] sm:$0xff] %v34
    %67 = vst [vmem:[#allocation5 + $0x50] sm:$0xff] %v35
    %68 = vst [vmem:[#allocation5 + $0x58] sm:$0xff] %v36
    %69 = vst [vmem:[#allocation5 + $0x60] sm:$0xff] %v37
    %70 = vst [vmem:[#allocation5 + $0x68] sm:$0xff] %v38
    %71 = vst [vmem:[#allocation5 + $0x70] sm:$0xff] %v39
    %72 = vst [vmem:[#allocation5 + $0x78] sm:$0xff] %v40
    %73 = vst [vmem:[#allocation5 + $0x80] sm:$0xff] %v41
    %74 = vst [vmem:[#allocation5 + $0x88] sm:$0xff] %v42
    %75 = vst [vmem:[#allocation5 + $0x90] sm:$0xff] %v43
    %76 = vst [vmem:[#allocation5 + $0x98] sm:$0xff] %v44
    %77 = vst [vmem:[#allocation5 + $0xa0] sm:$0xff] %v45
    %78 = vst [vmem:[#allocation5 + $0xa8] sm:$0xff] %v46
    %79 = vst [vmem:[#allocation5 + $0xb0] sm:$0xff] %v47
    %80 = vst [vmem:[#allocation5 + $0xb8] sm:$0xff] %v48
    %81 = vst [vmem:[#allocation5 + $0xc0] sm:$0xff] %v49
    %82 = vst [vmem:[#allocation5 + $0xc8] sm:$0xff] %v50
    %83 = vst [vmem:[#allocation5 + $0xd0] sm:$0xff] %v51
    %84 = vst [vmem:[#allocation5 + $0xd8] sm:$0xff] %v52
    %85 = vst [vmem:[#allocation5 + $0xe0] sm:$0xff] %v53
    %86 = vst [vmem:[#allocation5 + $0xe8] sm:$0xff] %v54
    %87 = vst [vmem:[#allocation5 + $0xf0] sm:$0xff] %v55
    %88 = vst [vmem:[#allocation5 + $0xf8] sm:$0xff] %v56
    // Predicated region
    $region10: #{tpu_custom_call.1} parent=1 // pred_check
      _
    $region11: #{tpu_custom_call.1} parent=1 // pred_check_branch
      %90 = sbr.rel (0) target = $region13
    $region12: #{tpu_custom_call.1} parent=1 // pred_region
      %92 = vsyncadd [#allocation4], 0
      %s93 = sshll.u32 [#allocation5], 4
      %s94 = int_to_ptr.vmem [resolvable:$true] %s93
      %s95 = sshll.u32 %s1, 4
      %s96 = int_to_ptr.hbm [resolvable:$true] %s95
      %101 = dma.vmem_to_hbm [thread:$0]  %s94, 4096, %s96, [#allocation4], 1024, 1024, 64
    $region13: #{tpu_custom_call.1} parent=1 // pred_fallthru
      _
    // Predicated region
    $region14: #{tpu_custom_call.1} parent=1 // pred_check
      _
    $region15: #{tpu_custom_call.1} parent=1 // pred_check_branch
      %103 = sbr.rel (0) target = $region17
    $region16: #{tpu_custom_call.1} parent=1 // pred_region
      %105 = dma.done [#allocation4], 4096
    $region17: #{tpu_custom_call.1} parent=1 // pred_fallthru
      _
    %106 = vsyncpa [#allocation3], 1
    %107 = vsyncpa [#allocation4], 1

</llo_original>
